<compile_context>
chip_gen: v6e
topology: v6e:2x2x1
jax: 0.10.0
libtpu: 0.0.40
codegen_flags: <defaults>
</compile_context>

<pallas_src>
import jax
import jax.numpy as jnp
from jax.experimental import pallas as pl
from jax.experimental.pallas import tpu as pltpu

# ---------------- problem sizes (small, consistent with the module) ----------
N_ATOMS = 16          # total nodes across the batch
NUM_GRAPHS = 2        # systems in the Batch
NUM_ELEMENTS = 10     # size of atomic-number embedding table
EMB_DIM = 16          # atom embedding dim
POS_DIM = 3
HIDDEN = 32           # backbone / head hidden width
ONEHOT_W = 32         # padded one-hot width for the in-kernel embedding lookup
XIN_W = 8             # packed node input lanes: [z, px, py, pz, 0, 0, 0, 0]
OUT_LANES = 128       # lane-dense packed output slab width
ENERGY_COL = 3        # slab col 3 = per-node energy; cols 0..2 = forces

# ---- w_h slab row layout: all HIDDEN-wide weights/biases in ONE VMEM slab ----
R_WEMB = 0                    # [ONEHOT_W, HIDDEN] onehot(z)->hidden (embedding folded into bb_w1)
R_WXIN = ONEHOT_W             # [XIN_W, HIDDEN]    packed node input->hidden (z row = 0, pos rows)
R_W2 = R_WXIN + XIN_W         # 40  [HIDDEN, HIDDEN] backbone layer 2
R_W3 = R_W2 + HIDDEN          # 72  [HIDDEN, HIDDEN] energy-head hidden layer
R_B1 = 104                    # bias rows (each 8-row aligned)
R_B2 = 112
R_B3 = 120
WH_ROWS = 128

# ---- w_out slab: fused output projection [2*HIDDEN, 128] + bias row ----------
R_BOUT = 2 * HIDDEN           # 64
WOUT_ROWS = 72

MAX_NODE_TILE = 4096          # ~4.3 MiB double-buffered working set at f32


# ----------------------------- fused Pallas kernel ----------------------------
def _hydra_fused_kernel(xin_ref, wh_ref, wout_ref, o_ref):
    x = xin_ref[...]                                        # [TN, 8]
    tn = x.shape[0]

    # ---- in-kernel "embedding lookup": one-hot(z) @ (atom_embedding @ bb_w1) --
    z = x[:, 0:1].astype(jnp.int32)                         # [TN, 1]
    onehot = (z == jax.lax.broadcasted_iota(jnp.int32, (tn, ONEHOT_W), 1)
              ).astype(jnp.float32)                         # [TN, 32]

    # static, zero-cost views into the consolidated weight slab
    w_emb = wh_ref[R_WEMB:R_WEMB + ONEHOT_W, :]             # [32, 32]
    w_xin = wh_ref[R_WXIN:R_WXIN + XIN_W, :]                # [8, 32]
    w2 = wh_ref[R_W2:R_W2 + HIDDEN, :]                      # [32, 32]
    w3 = wh_ref[R_W3:R_W3 + HIDDEN, :]                      # [32, 32]
    b1 = wh_ref[R_B1:R_B1 + 1, :]                           # [1, 32]
    b2 = wh_ref[R_B2:R_B2 + 1, :]
    b3 = wh_ref[R_B3:R_B3 + 1, :]

    # ---- backbone: node MLP (channels on the lane axis) -----------------------
    h = (jnp.dot(onehot, w_emb, preferred_element_type=jnp.float32)
         + jnp.dot(x, w_xin, preferred_element_type=jnp.float32) + b1)
    h = jax.nn.gelu(h, approximate=True)        # tanh-GELU (EUP path)
    node_emb = jnp.dot(h, w2, preferred_element_type=jnp.float32) + b2   # [TN, H]

    # ---- energy head hidden layer ---------------------------------------------
    h2 = jax.nn.gelu(
        jnp.dot(node_emb, w3, preferred_element_type=jnp.float32) + b3,
        approximate=True)                                                # [TN, H]

    # ---- fused output projection: one [TN,64] x [64,128] MXU op ---------------
    #   cols 0..2 : forces  = node_emb @ fc_w + fc_b
    #   col  3    : e_node  = h2 @ en_w2 + en_b2
    lhs = jnp.concatenate([node_emb, h2], axis=-1)                       # [TN, 64]
    out = (jnp.dot(lhs, wout_ref[0:R_BOUT, :], preferred_element_type=jnp.float32)
           + wout_ref[R_BOUT:R_BOUT + 1, :])                             # [TN, 128]
    o_ref[...] = out.astype(o_ref.dtype)


# ----------------------------- wrapper ----------------------------------------
def _round_up(x, m):
    return (x + m - 1) // m * m


def _choose_node_tile(n):
    """Fixed tile + cdiv grid.  Tiny N: single step (launch-bound).  Larger N:
    >=2 grid steps so ('parallel',) shards across v7x's 2 TCs, capped at
    MAX_NODE_TILE for pipelined row DMA and bounded per-tile VMEM."""
    if n <= 256:
        return _round_up(n, 8)
    return min(MAX_NODE_TILE, _round_up((n + 1) // 2, 8))


def hydra_fused_call(packed, x_in, tile_n):
    n_pad = x_in.shape[0]
    w_h, w_out = packed["w_h"], packed["w_out"]

    flops_per_node = 2 * (ONEHOT_W * HIDDEN        # embedding/one-hot matmul
                          + XIN_W * HIDDEN         # pos contribution
                          + HIDDEN * HIDDEN        # backbone layer 2
                          + HIDDEN * HIDDEN        # energy hidden layer
                          + 2 * HIDDEN * OUT_LANES)  # fused output projection
    cost = pl.CostEstimate(
        flops=n_pad * flops_per_node,
        transcendentals=2 * n_pad * HIDDEN,        # two gelu layers
        bytes_accessed=4 * (x_in.size + n_pad * OUT_LANES
                            + int(w_h.size) + int(w_out.size)))

    return pl.pallas_call(
        _hydra_fused_kernel,
        out_shape=jax.ShapeDtypeStruct((n_pad, OUT_LANES), jnp.float32),
        grid=(n_pad // tile_n,),
        in_specs=[pl.BlockSpec((tile_n, XIN_W), lambda i: (i, 0)),
                  pl.BlockSpec(w_h.shape, lambda i: (0, 0)),
                  pl.BlockSpec(w_out.shape, lambda i: (0, 0))],
        out_specs=pl.BlockSpec((tile_n, OUT_LANES), lambda i: (i, 0)),
        compiler_params=pltpu.CompilerParams(
            dimension_semantics=("parallel",),
            vmem_limit_bytes=32 * 1024 * 1024),
        cost_estimate=cost,
    )(x_in, w_h, w_out)


def _pack_params(params):
    """Build the two kernel-ready VMEM weight slabs once (plain-JAX glue)."""
    # embedding lookup folded into backbone layer 1: onehot(z) @ (E @ W1_emb)
    emb_to_h = params["atom_embedding"] @ params["bb_w1"][:EMB_DIM]   # [NE, H]

    w_h = jnp.zeros((WH_ROWS, HIDDEN), jnp.float32)
    w_h = w_h.at[R_WEMB:R_WEMB + NUM_ELEMENTS, :].set(emb_to_h)
    w_h = w_h.at[R_WXIN + 1:R_WXIN + 1 + POS_DIM, :].set(
        params["bb_w1"][EMB_DIM:EMB_DIM + POS_DIM])   # x_in col0 (z) row stays 0
    w_h = w_h.at[R_W2:R_W2 + HIDDEN, :].set(params["bb_w2"])
    w_h = w_h.at[R_W3:R_W3 + HIDDEN, :].set(params["en_w1"])
    w_h = w_h.at[R_B1, :].set(params["bb_b1"][0])
    w_h = w_h.at[R_B2, :].set(params["bb_b2"][0])
    w_h = w_h.at[R_B3, :].set(params["en_b1"][0])

    # fused output projection: rows 0..H-1 act on node_emb, rows H..2H-1 on h2
    w_out = jnp.zeros((WOUT_ROWS, OUT_LANES), jnp.float32)
    w_out = w_out.at[0:HIDDEN, 0:POS_DIM].set(params["fc_w"])
    w_out = w_out.at[HIDDEN:2 * HIDDEN, ENERGY_COL:ENERGY_COL + 1].set(params["en_w2"])
    w_out = w_out.at[R_BOUT, 0:POS_DIM].set(params["fc_b"][0])
    w_out = w_out.at[R_BOUT, ENERGY_COL].set(params["en_b2"][0, 0])

    return {"w_h": w_h, "w_out": w_out}


class HydraModel:
    """JAX/Pallas mirror of fairchem HydraModel.forward semantics.

    backbone + both heads (embedding lookup included) execute inside one fused
    Pallas kernel; input packing, output slicing and the per-graph segment sum
    are plain-JAX glue ("batch" never enters the kernel).
    """

    def __init__(self, params, pass_through_head_outputs: bool = False):
        self.params = params
        self.packed = _pack_params(params)
        self.pass_through_head_outputs = pass_through_head_outputs
        # head names processed in sorted order, as in the torch module
        self.head_names = ("energy", "forces")

    def forward(self, data):
        z = data["atomic_numbers"].astype(jnp.float32)                  # [N]
        pos = data["pos"].astype(jnp.float32)                           # [N, 3]
        n = z.shape[0]

        tile_n = _choose_node_tile(n)
        n_pad = _round_up(n, tile_n)

        # packed node-input slab: col0 = atomic number, cols 1..3 = pos
        x_in = (jnp.zeros((n_pad, XIN_W), jnp.float32)
                .at[:n, 0].set(z)
                .at[:n, 1:1 + POS_DIM].set(pos))

        # fused backbone + heads kernel -> packed [N_pad, 128] slab
        out_slab = hydra_fused_call(self.packed, x_in, tile_n)

        # head post-processing (glue)
        forces = out_slab[:n, 0:POS_DIM]                                 # [N, 3]
        e_node = out_slab[:n, ENERGY_COL]                                # [N]
        batch = data["batch"].astype(jnp.int32)
        energy = jnp.zeros((NUM_GRAPHS,), jnp.float32).at[batch].add(e_node)

        head_outputs = {"energy": {"energy": energy},
                        "forces": {"forces": forces}}

        out = {}
        for k in sorted(self.head_names):
            if self.pass_through_head_outputs:
                out.update(head_outputs[k])
            else:
                out[k] = head_outputs[k]
        return out


def init_params(key):
    ks = jax.random.split(key, 10)
    s = 0.1
    return {
        "atom_embedding": s * jax.random.normal(ks[0], (NUM_ELEMENTS, EMB_DIM), jnp.float32),
        # backbone MLP
        "bb_w1": s * jax.random.normal(ks[1], (EMB_DIM + POS_DIM, HIDDEN), jnp.float32),
        "bb_b1": jnp.zeros((1, HIDDEN), jnp.float32),
        "bb_w2": s * jax.random.normal(ks[2], (HIDDEN, HIDDEN), jnp.float32),
        "bb_b2": jnp.zeros((1, HIDDEN), jnp.float32),
        # energy head MLP
        "en_w1": s * jax.random.normal(ks[3], (HIDDEN, HIDDEN), jnp.float32),
        "en_b1": jnp.zeros((1, HIDDEN), jnp.float32),
        "en_w2": s * jax.random.normal(ks[4], (HIDDEN, 1), jnp.float32),
        "en_b2": jnp.zeros((1, 1), jnp.float32),
        # forces head linear
        "fc_w": s * jax.random.normal(ks[5], (HIDDEN, 3), jnp.float32),
        "fc_b": jnp.zeros((1, 3), jnp.float32),
    }


def _reference_forward(params, data):
    """Pure-JAX reference of the same synthetic backbone + heads."""
    emb = params["atom_embedding"][data["atomic_numbers"]]
    x = jnp.concatenate([emb, data["pos"].astype(jnp.float32)], axis=1)
    h = jax.nn.gelu(x @ params["bb_w1"] + params["bb_b1"], approximate=True)
    node_emb = h @ params["bb_w2"] + params["bb_b2"]
    h2 = jax.nn.gelu(node_emb @ params["en_w1"] + params["en_b1"], approximate=True)
    e_node = (h2 @ params["en_w2"] + params["en_b2"])[:, 0]
    forces = node_emb @ params["fc_w"] + params["fc_b"]
    batch = data["batch"].astype(jnp.int32)
    energy = jnp.zeros((NUM_GRAPHS,), jnp.float32).at[batch].add(e_node)
    return energy, forces


if __name__ == "__main__":
    key = jax.random.PRNGKey(0)
    k_param, k_z, k_pos = jax.random.split(key, 3)

    params = init_params(k_param)

    data = {
        "atomic_numbers": jax.random.randint(k_z, (N_ATOMS,), 0, NUM_ELEMENTS, jnp.int32),
        "pos": jax.random.normal(k_pos, (N_ATOMS, 3), jnp.float32),
        "batch": jnp.concatenate(
            [jnp.zeros(N_ATOMS // 2, jnp.int32), jnp.ones(N_ATOMS - N_ATOMS // 2, jnp.int32)]
        ),
    }

    model = HydraModel(params, pass_through_head_outputs=False)
    out = model.forward(data)
    jax.block_until_ready(out)

    assert out["energy"]["energy"].shape == (NUM_GRAPHS,)
    assert out["forces"]["forces"].shape == (N_ATOMS, 3)
    assert jnp.all(jnp.isfinite(out["energy"]["energy"]))
    assert jnp.all(jnp.isfinite(out["forces"]["forces"]))

    # numerical check against the pure-JAX reference
    ref_energy, ref_forces = _reference_forward(params, data)
    assert jnp.allclose(out["energy"]["energy"], ref_energy, rtol=1e-4, atol=1e-4)
    assert jnp.allclose(out["forces"]["forces"], ref_forces, rtol=1e-4, atol=1e-4)

    print("KERNEL_OK")
</pallas_src>

<mosaic_0001>
module attributes {stable_mosaic.version = 11 : i64} {
  func.func @_hydra_fused_kernel(%arg0: i32, %arg1: memref<16x8xf32, #tpu.memory_space<vmem>>, %arg2: memref<128x32xf32, #tpu.memory_space<vmem>>, %arg3: memref<72x128xf32, #tpu.memory_space<vmem>>, %arg4: memref<16x128xf32, #tpu.memory_space<vmem>>) attributes {dimension_semantics = [#tpu.dimension_semantics<parallel>], iteration_bounds = array<i64: 1>, scalar_prefetch = 0 : i64, scratch_operands = 0 : i64, tpu.core_type = #tpu.core_type<tc>, window_params = [{transform_indices = @transform_0, window_bounds = array<i64: 16, 8>}, {pipeline_mode = #tpu.pipeline_mode<synchronous>, transform_indices = @transform_1, window_bounds = array<i64: 128, 32>}, {pipeline_mode = #tpu.pipeline_mode<synchronous>, transform_indices = @transform_2, window_bounds = array<i64: 72, 128>}, {transform_indices = @transform_3, window_bounds = array<i64: 16, 128>}]} {
    %c0 = arith.constant 0 : index
    %c0_0 = arith.constant 0 : index
    %0 = vector.load %arg1[%c0, %c0_0] : memref<16x8xf32, #tpu.memory_space<vmem>>, vector<16x8xf32>
    %1 = vector.extract_strided_slice %0 {offsets = [0, 0], sizes = [16, 1], strides = [1, 1]} : vector<16x8xf32> to vector<16x1xf32>
    %2 = arith.fptosi %1 : vector<16x1xf32> to vector<16x1xi32>
    %3 = tpu.iota {dimensions = array<i32: 1>} : vector<16x32xi32>
    %4 = vector.broadcast %2 : vector<16x1xi32> to vector<16x32xi32>
    %5 = arith.cmpi eq, %4, %3 : vector<16x32xi32>
    %6 = arith.extui %5 : vector<16x32xi1> to vector<16x32xi32>
    %7 = arith.sitofp %6 : vector<16x32xi32> to vector<16x32xf32>
    %c0_1 = arith.constant 0 : index
    %c0_2 = arith.constant 0 : index
    %8 = vector.load %arg2[%c0_1, %c0_2] : memref<128x32xf32, #tpu.memory_space<vmem>>, vector<32x32xf32>
    %c32 = arith.constant 32 : index
    %c0_3 = arith.constant 0 : index
    %9 = vector.load %arg2[%c32, %c0_3] : memref<128x32xf32, #tpu.memory_space<vmem>>, vector<8x32xf32>
    %c40 = arith.constant 40 : index
    %c0_4 = arith.constant 0 : index
    %10 = vector.load %arg2[%c40, %c0_4] : memref<128x32xf32, #tpu.memory_space<vmem>>, vector<32x32xf32>
    %c72 = arith.constant 72 : index
    %c0_5 = arith.constant 0 : index
    %11 = vector.load %arg2[%c72, %c0_5] : memref<128x32xf32, #tpu.memory_space<vmem>>, vector<32x32xf32>
    %c104 = arith.constant 104 : index
    %c0_6 = arith.constant 0 : index
    %12 = vector.load %arg2[%c104, %c0_6] : memref<128x32xf32, #tpu.memory_space<vmem>>, vector<1x32xf32>
    %c112 = arith.constant 112 : index
    %c0_7 = arith.constant 0 : index
    %13 = vector.load %arg2[%c112, %c0_7] : memref<128x32xf32, #tpu.memory_space<vmem>>, vector<1x32xf32>
    %c120 = arith.constant 120 : index
    %c0_8 = arith.constant 0 : index
    %14 = vector.load %arg2[%c120, %c0_8] : memref<128x32xf32, #tpu.memory_space<vmem>>, vector<1x32xf32>
    %cst = arith.constant dense<0.000000e+00> : vector<16x32xf32>
    %15 = tpu.matmul %7, %8, %cst {dimension_numbers = #tpu.dot_dimension_numbers<[1], [0], [0], [1], [0, 0, 1, 1], [], []>} : vector<16x32xf32>, vector<32x32xf32>, vector<16x32xf32> -> vector<16x32xf32>
    %cst_9 = arith.constant dense<0.000000e+00> : vector<16x32xf32>
    %16 = tpu.matmul %0, %9, %cst_9 {dimension_numbers = #tpu.dot_dimension_numbers<[1], [0], [0], [1], [0, 0, 1, 1], [], []>} : vector<16x8xf32>, vector<8x32xf32>, vector<16x32xf32> -> vector<16x32xf32>
    %17 = arith.addf %15, %16 : vector<16x32xf32>
    %18 = vector.broadcast %12 : vector<1x32xf32> to vector<16x32xf32>
    %19 = arith.addf %17, %18 : vector<16x32xf32>
    %20 = arith.mulf %19, %19 : vector<16x32xf32>
    %21 = arith.mulf %19, %20 : vector<16x32xf32>
    %cst_10 = arith.constant 4.471500e-02 : f32
    %22 = vector.broadcast %cst_10 : f32 to vector<16x32xf32>
    %23 = arith.mulf %22, %21 : vector<16x32xf32>
    %24 = arith.addf %19, %23 : vector<16x32xf32>
    %cst_11 = arith.constant 0.797884583 : f32
    %25 = vector.broadcast %cst_11 : f32 to vector<16x32xf32>
    %26 = arith.mulf %25, %24 : vector<16x32xf32>
    %27 = math.tanh %26 : vector<16x32xf32>
    %cst_12 = arith.constant 1.000000e+00 : f32
    %28 = vector.broadcast %cst_12 : f32 to vector<16x32xf32>
    %29 = arith.addf %28, %27 : vector<16x32xf32>
    %cst_13 = arith.constant 5.000000e-01 : f32
    %30 = vector.broadcast %cst_13 : f32 to vector<16x32xf32>
    %31 = arith.mulf %30, %29 : vector<16x32xf32>
    %32 = arith.mulf %19, %31 : vector<16x32xf32>
    %cst_14 = arith.constant dense<0.000000e+00> : vector<16x32xf32>
    %33 = tpu.matmul %32, %10, %cst_14 {dimension_numbers = #tpu.dot_dimension_numbers<[1], [0], [0], [1], [0, 0, 1, 1], [], []>} : vector<16x32xf32>, vector<32x32xf32>, vector<16x32xf32> -> vector<16x32xf32>
    %34 = vector.broadcast %13 : vector<1x32xf32> to vector<16x32xf32>
    %35 = arith.addf %33, %34 : vector<16x32xf32>
    %cst_15 = arith.constant dense<0.000000e+00> : vector<16x32xf32>
    %36 = tpu.matmul %35, %11, %cst_15 {dimension_numbers = #tpu.dot_dimension_numbers<[1], [0], [0], [1], [0, 0, 1, 1], [], []>} : vector<16x32xf32>, vector<32x32xf32>, vector<16x32xf32> -> vector<16x32xf32>
    %37 = vector.broadcast %14 : vector<1x32xf32> to vector<16x32xf32>
    %38 = arith.addf %36, %37 : vector<16x32xf32>
    %39 = arith.mulf %38, %38 : vector<16x32xf32>
    %40 = arith.mulf %38, %39 : vector<16x32xf32>
    %cst_16 = arith.constant 4.471500e-02 : f32
    %41 = vector.broadcast %cst_16 : f32 to vector<16x32xf32>
    %42 = arith.mulf %41, %40 : vector<16x32xf32>
    %43 = arith.addf %38, %42 : vector<16x32xf32>
    %cst_17 = arith.constant 0.797884583 : f32
    %44 = vector.broadcast %cst_17 : f32 to vector<16x32xf32>
    %45 = arith.mulf %44, %43 : vector<16x32xf32>
    %46 = math.tanh %45 : vector<16x32xf32>
    %cst_18 = arith.constant 1.000000e+00 : f32
    %47 = vector.broadcast %cst_18 : f32 to vector<16x32xf32>
    %48 = arith.addf %47, %46 : vector<16x32xf32>
    %cst_19 = arith.constant 5.000000e-01 : f32
    %49 = vector.broadcast %cst_19 : f32 to vector<16x32xf32>
    %50 = arith.mulf %49, %48 : vector<16x32xf32>
    %51 = arith.mulf %38, %50 : vector<16x32xf32>
    %52 = tpu.concatenate %35, %51 in 1 : vector<16x32xf32>, vector<16x32xf32> -> vector<16x64xf32>
    %c0_20 = arith.constant 0 : index
    %c0_21 = arith.constant 0 : index
    %53 = vector.load %arg3[%c0_20, %c0_21] : memref<72x128xf32, #tpu.memory_space<vmem>>, vector<64x128xf32>
    %cst_22 = arith.constant dense<0.000000e+00> : vector<16x128xf32>
    %54 = tpu.matmul %52, %53, %cst_22 {dimension_numbers = #tpu.dot_dimension_numbers<[1], [0], [0], [1], [0, 0, 1, 1], [], []>} : vector<16x64xf32>, vector<64x128xf32>, vector<16x128xf32> -> vector<16x128xf32>
    %c64 = arith.constant 64 : index
    %c0_23 = arith.constant 0 : index
    %55 = vector.load %arg3[%c64, %c0_23] : memref<72x128xf32, #tpu.memory_space<vmem>>, vector<1x128xf32>
    %56 = vector.broadcast %55 : vector<1x128xf32> to vector<16x128xf32>
    %57 = arith.addf %54, %56 : vector<16x128xf32>
    %c0_24 = arith.constant 0 : index
    %c0_25 = arith.constant 0 : index
    %58 = vector.load %arg4[%c0_24, %c0_25] : memref<16x128xf32, #tpu.memory_space<vmem>>, vector<16x128xf32>
    tpu.vector_store %arg4[%c0_24, %c0_25], %57 {strides = array<i32>} : memref<16x128xf32, #tpu.memory_space<vmem>>, vector<16x128xf32>,
    return
  }
  func.func @transform_0(%arg0: i32) -> (i32, i32) {
    %c0_i32 = arith.constant 0 : i32
    %c0_i32_0 = arith.constant 0 : i32
    return %arg0, %c0_i32 : i32, i32
  }
  func.func @transform_1(%arg0: i32) -> (i32, i32) {
    %c0_i32 = arith.constant 0 : i32
    %c0_i32_0 = arith.constant 0 : i32
    %c0_i32_1 = arith.constant 0 : i32
    return %c0_i32, %c0_i32_0 : i32, i32
  }
  func.func @transform_2(%arg0: i32) -> (i32, i32) {
    %c0_i32 = arith.constant 0 : i32
    %c0_i32_0 = arith.constant 0 : i32
    %c0_i32_1 = arith.constant 0 : i32
    return %c0_i32, %c0_i32_0 : i32, i32
  }
  func.func @transform_3(%arg0: i32) -> (i32, i32) {
    %c0_i32 = arith.constant 0 : i32
    %c0_i32_0 = arith.constant 0 : i32
    return %arg0, %c0_i32 : i32, i32
  }
}

</mosaic_0001>

<llo_original>
// kernel: tpu_custom_call.1
$region0: #{tpu_custom_call.1}
  #allocation0 [shape = 'u32[]', space=smem, size = 0x4, offset = 0x4, fixed_abs, tag = 'smem constant byte address 0x4 - core index']
  #allocation1 [shape = 'u32[144,128]{1,0:T(1,128)}', space=vmem, size = 0x12000, scoped, tag = 'internal scratch']
  %s0 = inlined_call_operand.vmem [shape: f32[16,8], index: 0, kind: input, shape index: {}]
  %s1 = inlined_call_operand.vmem [shape: f32[128,32], index: 1, kind: input, shape index: {}]
  %s2 = inlined_call_operand.vmem [shape: f32[72,128], index: 2, kind: input, shape index: {}]
  %s3 = inlined_call_operand.hbm [shape: f32[16,128], index: 3, kind: output, shape index: {}]
  %s4 = sld [smem:[#allocation0]]
  $region22: #{tpu_custom_call.1} parent=0
    _
  %s6 = ssub.s32 1, %s4
  %s7 = scalar_select 0, %s6, %s4
  $region1: #{tpu_custom_call.1} parent=0
    #allocation2 [shape = 'u8[8192]{0}', space=vmem, size = 0x2000, scoped, tag = 'output window, operand 0, single buffered']
    #allocation3 [shape = 's32[1]{0}', space=sflag, size = 0x4, scoped, tag = 'scoped memory for tpu_custom_call.1']
    %8 = vsyncpa [#allocation3], 0
    // Predicated region
    $region2: #{tpu_custom_call.1} parent=1 // pred_check
      _
    $region3: #{tpu_custom_call.1} parent=1 // pred_check_branch
      %10 = sbr.rel (0) target = $region5
    $region4: #{tpu_custom_call.1} parent=1 // pred_region
      _
    $region5: #{tpu_custom_call.1} parent=1 // pred_fallthru
      _
    // Predicated region
    $region6: #{tpu_custom_call.1} parent=1 // pred_check
      _
    $region7: #{tpu_custom_call.1} parent=1 // pred_check_branch
      %12 = sbr.rel (0) target = $region9
    $region8: #{tpu_custom_call.1} parent=1 // pred_region
      _
    $region9: #{tpu_custom_call.1} parent=1 // pred_fallthru
      _
    // Predicated region
    $region10: #{tpu_custom_call.1} parent=1 // pred_check
      _
    $region11: #{tpu_custom_call.1} parent=1 // pred_check_branch
      %14 = sbr.rel (0) target = $region13
    $region12: #{tpu_custom_call.1} parent=1 // pred_region
      _
    $region13: #{tpu_custom_call.1} parent=1 // pred_fallthru
      _
    %v15 = vld [vmem:[%s0] sm:$0xff]
    %v16 = vld [vmem:[%s0 + $0x8] sm:$0xff]
    %v17 = vcvt.f32.s32.to.zero.pseudo %v15
    %v18 = vcvt.f32.s32.to.zero.pseudo %v16
    %v19 = vlaneseq
    %v20 = vand.u32 %v19, 127
    %21 = vset.pattern.permute.xlu0 0
    %22 = vperm.xlu0 %21, %v17
    %v23 = vpop.permute.xlu0 %22
    %24 = vset.pattern.permute.xlu0 0
    %25 = vperm.xlu0 %24, %v18
    %v26 = vpop.permute.xlu0 %25
    %vm27 = vcmp.eq.s32.totalorder %v23, %v20
    %vm28 = vcmp.eq.s32.totalorder %v26, %v20
    %v29 = vsel %vm27, 1, 0
    %v30 = vsel %vm28, 1, 0
    %v31 = vcvt.s32.f32 %v29
    %v32 = vcvt.s32.f32 %v30
    %v33 = vld [vmem:[%s1] sm:$0xff]
    %v34 = vld [vmem:[%s1 + $0x8] sm:$0xff]
    %v35 = vld [vmem:[%s1 + $0x10] sm:$0xff]
    %v36 = vld [vmem:[%s1 + $0x18] sm:$0xff]
    %v37 = vld [vmem:[%s1 + $0x20] sm:$0xff]
    %v38 = vld [vmem:[%s1 + $0x28] sm:$0xff]
    %v39 = vld [vmem:[%s1 + $0x30] sm:$0xff]
    %v40 = vld [vmem:[%s1 + $0x38] sm:$0xff]
    %v41 = vld [vmem:[%s1 + $0x40] sm:$0xff]
    %v42 = vld [vmem:[%s1 + $0x48] sm:$0xff]
    %v43 = vld [vmem:[%s1 + $0x50] sm:$0xff]
    %v44 = vld [vmem:[%s1 + $0x58] sm:$0xff]
    %v45 = vld [vmem:[%s1 + $0x60] sm:$0xff]
    %v46 = vld [vmem:[%s1 + $0x68] sm:$0x1]
    %v47 = vld [vmem:[%s1 + $0x70] sm:$0x1]
    %v48 = vld [vmem:[%s1 + $0x78] sm:$0x1]
    %vm49 = vcmask 64512
    %v51 = vsel %vm49, %v15, 0
    %v54 = vsel %vm49, %v16, 0
    %56 = vmatprep.subr.mxu0 0.0
    %57 = vmatpush1.msra.mxu0 0.0
    %58 = vmatprep.subr.mxu0 0.0
    %59 = vmatpush1.msra.mxu0 0.0
    %60 = vmatprep.subr.mxu0 0.0
    %61 = vmatpush1.msra.mxu0 0.0
    %62 = vmatprep.subr.mxu0 0.0
    %63 = vmatpush1.msra.mxu0 0.0
    %64 = vmatprep.subr.mxu0 0.0
    %65 = vmatpush1.msra.mxu0 0.0
    %66 = vmatprep.subr.mxu0 0.0
    %67 = vmatpush1.msra.mxu0 0.0
    %68 = vmatprep.subr.mxu0 0.0
    %69 = vmatpush1.msra.mxu0 0.0
    %70 = vmatprep.subr.mxu0 0.0
    %71 = vmatpush1.msra.mxu0 0.0
    %72 = vmatprep.subr.mxu0 0.0
    %73 = vmatpush1.msra.mxu0 0.0
    %74 = vmatprep.subr.mxu0 0.0
    %75 = vmatpush1.msra.mxu0 0.0
    %76 = vmatprep.subr.mxu0 0.0
    %77 = vmatpush1.msra.mxu0 0.0
    %78 = vmatprep.subr.mxu0 0.0
    %79 = vmatpush1.msra.mxu0 0.0
    %80 = vmatprep.subr.mxu0 0.0
    %81 = vmatpush1.msra.mxu0 0.0
    %82 = vmatprep.subr.mxu0 0.0
    %83 = vmatpush1.msra.mxu0 0.0
    %84 = vmatprep.subr.mxu0 0.0
    %85 = vmatpush1.msra.mxu0 0.0
    %86 = vmatprep.subr.mxu0 0.0
    %87 = vmatpush1.msra.mxu0 %v37
    %88 = vmatprep.subr.mxu0 0.0
    %89 = vmatpush2.msra.mxu0 0.0
    %90 = vmatprep.subr.mxu0 0.0
    %91 = vmatpush2.msra.mxu0 0.0
    %92 = vmatprep.subr.mxu0 0.0
    %93 = vmatpush2.msra.mxu0 0.0
    %94 = vmatprep.subr.mxu0 0.0
    %95 = vmatpush2.msra.mxu0 0.0
    %96 = vmatprep.subr.mxu0 0.0
    %97 = vmatpush2.msra.mxu0 0.0
    %98 = vmatprep.subr.mxu0 0.0
    %99 = vmatpush2.msra.mxu0 0.0
    %100 = vmatprep.subr.mxu0 0.0
    %101 = vmatpush2.msra.mxu0 0.0
    %102 = vmatprep.subr.mxu0 0.0
    %103 = vmatpush2.msra.mxu0 0.0
    %104 = vmatprep.subr.mxu0 0.0
    %105 = vmatpush2.msra.mxu0 0.0
    %106 = vmatprep.subr.mxu0 0.0
    %107 = vmatpush2.msra.mxu0 0.0
    %108 = vmatprep.subr.mxu0 0.0
    %109 = vmatpush2.msra.mxu0 0.0
    %110 = vmatprep.subr.mxu0 0.0
    %111 = vmatpush2.msra.mxu0 0.0
    %112 = vmatprep.subr.mxu0 0.0
    %113 = vmatpush2.msra.mxu0 0.0
    %114 = vmatprep.subr.mxu0 0.0
    %115 = vmatpush2.msra.mxu0 0.0
    %116 = vmatprep.subr.mxu0 0.0
    %117 = vmatpush2.msra.mxu0 0.0
    %118 = vmatprep.subr.mxu0 0.0
    %119 = vmatpush2.msra.mxu0 0.0
    %120 = vmatprep.mubr.f32.mxu0 0.0
    %121 = vmatmul.mubr.f32.gmra.mxu0 %v51
    %v122 = vpop.f32.mrf.mxu0
    %v123 = vadd.f32 0.0, %v122
    %v124 = vpop.f32.mrf.mxu0
    %125 = vmatprep.mubr.f32.mxu0 0.0
    %126 = vmatmul.mubr.f32.gmra.mxu0 %v54
    %v127 = vpop.f32.mrf.mxu0
    %v128 = vadd.f32 0.0, %v127
    %v129 = vpop.f32.mrf.mxu0
    %130 = vdwg.mxu0
    %vm131 = vcmask 261120
    %v133 = vsel %vm131, %v31, 0
    %v136 = vsel %vm131, %v32, 0
    %138 = vmatprep.subr.mxu0 0.0
    %139 = vmatpush1.msra.mxu0 0.0
    %140 = vmatprep.subr.mxu0 0.0
    %141 = vmatpush1.msra.mxu0 0.0
    %142 = vmatprep.subr.mxu0 0.0
    %143 = vmatpush1.msra.mxu0 0.0
    %144 = vmatprep.subr.mxu0 0.0
    %145 = vmatpush1.msra.mxu0 0.0
    %146 = vmatprep.subr.mxu0 0.0
    %147 = vmatpush1.msra.mxu0 0.0
    %148 = vmatprep.subr.mxu0 0.0
    %149 = vmatpush1.msra.mxu0 0.0
    %150 = vmatprep.subr.mxu0 0.0
    %151 = vmatpush1.msra.mxu0 0.0
    %152 = vmatprep.subr.mxu0 0.0
    %153 = vmatpush1.msra.mxu0 0.0
    %154 = vmatprep.subr.mxu0 0.0
    %155 = vmatpush1.msra.mxu0 0.0
    %156 = vmatprep.subr.mxu0 0.0
    %157 = vmatpush1.msra.mxu0 0.0
    %158 = vmatprep.subr.mxu0 0.0
    %159 = vmatpush1.msra.mxu0 0.0
    %160 = vmatprep.subr.mxu0 0.0
    %161 = vmatpush1.msra.mxu0 0.0
    %162 = vmatprep.subr.mxu0 0.0
    %163 = vmatpush1.msra.mxu0 %v36
    %164 = vmatprep.subr.mxu0 0.0
    %165 = vmatpush1.msra.mxu0 %v35
    %166 = vmatprep.subr.mxu0 0.0
    %167 = vmatpush1.msra.mxu0 %v34
    %168 = vmatprep.subr.mxu0 0.0
    %169 = vmatpush1.msra.mxu0 %v33
    %170 = vmatprep.subr.mxu0 0.0
    %171 = vmatpush2.msra.mxu0 0.0
    %172 = vmatprep.subr.mxu0 0.0
    %173 = vmatpush2.msra.mxu0 0.0
    %174 = vmatprep.subr.mxu0 0.0
    %175 = vmatpush2.msra.mxu0 0.0
    %176 = vmatprep.subr.mxu0 0.0
    %177 = vmatpush2.msra.mxu0 0.0
    %178 = vmatprep.subr.mxu0 0.0
    %179 = vmatpush2.msra.mxu0 0.0
    %180 = vmatprep.subr.mxu0 0.0
    %181 = vmatpush2.msra.mxu0 0.0
    %182 = vmatprep.subr.mxu0 0.0
    %183 = vmatpush2.msra.mxu0 0.0
    %184 = vmatprep.subr.mxu0 0.0
    %185 = vmatpush2.msra.mxu0 0.0
    %186 = vmatprep.subr.mxu0 0.0
    %187 = vmatpush2.msra.mxu0 0.0
    %188 = vmatprep.subr.mxu0 0.0
    %189 = vmatpush2.msra.mxu0 0.0
    %190 = vmatprep.subr.mxu0 0.0
    %191 = vmatpush2.msra.mxu0 0.0
    %192 = vmatprep.subr.mxu0 0.0
    %193 = vmatpush2.msra.mxu0 0.0
    %194 = vmatprep.subr.mxu0 0.0
    %195 = vmatpush2.msra.mxu0 0.0
    %196 = vmatprep.subr.mxu0 0.0
    %197 = vmatpush2.msra.mxu0 0.0
    %198 = vmatprep.subr.mxu0 0.0
    %199 = vmatpush2.msra.mxu0 0.0
    %200 = vmatprep.subr.mxu0 0.0
    %201 = vmatpush2.msra.mxu0 0.0
    %202 = vmatprep.mubr.f32.mxu0 0.0
    %203 = vmatmul.mubr.f32.gmra.mxu0 %v133
    %v204 = vpop.f32.mrf.mxu0
    %v205 = vadd.f32 %v123, %v204
    %v206 = vpop.f32.mrf.mxu0
    %207 = vmatprep.mubr.f32.mxu0 0.0
    %208 = vmatmul.mubr.f32.gmra.mxu0 %v136
    %v209 = vpop.f32.mrf.mxu0
    %v210 = vadd.f32 %v128, %v209
    %v211 = vpop.f32.mrf.mxu0
    %212 = vdwg.mxu0
    %v213 = vlaneseq
    %v214 = vshrl.u32 %v213, 7
    %v215 = vsub.s32 0, %v214
    %v216 = vrot.slane %v46, %v215
    %v217 = vadd.f32 %v205, %v216
    %v218 = vadd.f32 %v210, %v216
    %v219 = vmul.f32 %v217, %v217
    %v220 = vmul.f32 %v218, %v218
    %v221 = vmul.f32 %v217, %v219
    %v222 = vmul.f32 %v218, %v220
    %v223 = vmul.f32 %v221, 0.044715
    %v224 = vmul.f32 %v222, 0.044715
    %v225 = vadd.f32 %v217, %v223
    %v226 = vadd.f32 %v218, %v224
    %v227 = vmul.f32 %v225, 0.7978846
    %v228 = vmul.f32 %v226, 0.7978846
    %v229 = vtanh.pop %v227
    %v230 = vtanh.pop %v228
    %v231 = vadd.f32 %v229, 1.0
    %v232 = vadd.f32 %v230, 1.0
    %v233 = vmul.f32 %v231, 0.5
    %v234 = vmul.f32 %v232, 0.5
    %v235 = vmul.f32 %v217, %v233
    %v236 = vmul.f32 %v218, %v234
    %v237 = vlaneseq
    %v238 = vshrl.u32 %v237, 7
    %v239 = vsub.s32 0, %v238
    %v240 = vrot.slane %v47, %v239
    %v242 = vsel %vm131, %v235, 0
    %v245 = vsel %vm131, %v236, 0
    %247 = vmatprep.subr.mxu0 0.0
    %248 = vmatpush1.msra.mxu0 0.0
    %249 = vmatprep.subr.mxu0 0.0
    %250 = vmatpush1.msra.mxu0 0.0
    %251 = vmatprep.subr.mxu0 0.0
    %252 = vmatpush1.msra.mxu0 0.0
    %253 = vmatprep.subr.mxu0 0.0
    %254 = vmatpush1.msra.mxu0 0.0
    %255 = vmatprep.subr.mxu0 0.0
    %256 = vmatpush1.msra.mxu0 0.0
    %257 = vmatprep.subr.mxu0 0.0
    %258 = vmatpush1.msra.mxu0 0.0
    %259 = vmatprep.subr.mxu0 0.0
    %260 = vmatpush1.msra.mxu0 0.0
    %261 = vmatprep.subr.mxu0 0.0
    %262 = vmatpush1.msra.mxu0 0.0
    %263 = vmatprep.subr.mxu0 0.0
    %264 = vmatpush1.msra.mxu0 0.0
    %265 = vmatprep.subr.mxu0 0.0
    %266 = vmatpush1.msra.mxu0 0.0
    %267 = vmatprep.subr.mxu0 0.0
    %268 = vmatpush1.msra.mxu0 0.0
    %269 = vmatprep.subr.mxu0 0.0
    %270 = vmatpush1.msra.mxu0 0.0
    %271 = vmatprep.subr.mxu0 0.0
    %272 = vmatpush1.msra.mxu0 %v41
    %273 = vmatprep.subr.mxu0 0.0
    %274 = vmatpush1.msra.mxu0 %v40
    %275 = vmatprep.subr.mxu0 0.0
    %276 = vmatpush1.msra.mxu0 %v39
    %277 = vmatprep.subr.mxu0 0.0
    %278 = vmatpush1.msra.mxu0 %v38
    %279 = vmatprep.subr.mxu0 0.0
    %280 = vmatpush2.msra.mxu0 0.0
    %281 = vmatprep.subr.mxu0 0.0
    %282 = vmatpush2.msra.mxu0 0.0
    %283 = vmatprep.subr.mxu0 0.0
    %284 = vmatpush2.msra.mxu0 0.0
    %285 = vmatprep.subr.mxu0 0.0
    %286 = vmatpush2.msra.mxu0 0.0
    %287 = vmatprep.subr.mxu0 0.0
    %288 = vmatpush2.msra.mxu0 0.0
    %289 = vmatprep.subr.mxu0 0.0
    %290 = vmatpush2.msra.mxu0 0.0
    %291 = vmatprep.subr.mxu0 0.0
    %292 = vmatpush2.msra.mxu0 0.0
    %293 = vmatprep.subr.mxu0 0.0
    %294 = vmatpush2.msra.mxu0 0.0
    %295 = vmatprep.subr.mxu0 0.0
    %296 = vmatpush2.msra.mxu0 0.0
    %297 = vmatprep.subr.mxu0 0.0
    %298 = vmatpush2.msra.mxu0 0.0
    %299 = vmatprep.subr.mxu0 0.0
    %300 = vmatpush2.msra.mxu0 0.0
    %301 = vmatprep.subr.mxu0 0.0
    %302 = vmatpush2.msra.mxu0 0.0
    %303 = vmatprep.subr.mxu0 0.0
    %304 = vmatpush2.msra.mxu0 0.0
    %305 = vmatprep.subr.mxu0 0.0
    %306 = vmatpush2.msra.mxu0 0.0
    %307 = vmatprep.subr.mxu0 0.0
    %308 = vmatpush2.msra.mxu0 0.0
    %309 = vmatprep.subr.mxu0 0.0
    %310 = vmatpush2.msra.mxu0 0.0
    %311 = vmatprep.mubr.f32.mxu0 0.0
    %312 = vmatmul.mubr.f32.gmra.mxu0 %v242
    %v313 = vpop.f32.mrf.mxu0
    %v314 = vadd.f32 %v240, %v313
    %v315 = vpop.f32.mrf.mxu0
    %316 = vmatprep.mubr.f32.mxu0 0.0
    %317 = vmatmul.mubr.f32.gmra.mxu0 %v245
    %v318 = vpop.f32.mrf.mxu0
    %v319 = vadd.f32 %v240, %v318
    %v320 = vpop.f32.mrf.mxu0
    %321 = vdwg.mxu0
    %v322 = vlaneseq
    %v323 = vshrl.u32 %v322, 7
    %v324 = vsub.s32 0, %v323
    %v325 = vrot.slane %v48, %v324
    %v327 = vsel %vm131, %v314, 0
    %v330 = vsel %vm131, %v319, 0
    %332 = vmatprep.subr.mxu0 0.0
    %333 = vmatpush1.msra.mxu0 0.0
    %334 = vmatprep.subr.mxu0 0.0
    %335 = vmatpush1.msra.mxu0 0.0
    %336 = vmatprep.subr.mxu0 0.0
    %337 = vmatpush1.msra.mxu0 0.0
    %338 = vmatprep.subr.mxu0 0.0
    %339 = vmatpush1.msra.mxu0 0.0
    %340 = vmatprep.subr.mxu0 0.0
    %341 = vmatpush1.msra.mxu0 0.0
    %342 = vmatprep.subr.mxu0 0.0
    %343 = vmatpush1.msra.mxu0 0.0
    %344 = vmatprep.subr.mxu0 0.0
    %345 = vmatpush1.msra.mxu0 0.0
    %346 = vmatprep.subr.mxu0 0.0
    %347 = vmatpush1.msra.mxu0 0.0
    %348 = vmatprep.subr.mxu0 0.0
    %349 = vmatpush1.msra.mxu0 0.0
    %350 = vmatprep.subr.mxu0 0.0
    %351 = vmatpush1.msra.mxu0 0.0
    %352 = vmatprep.subr.mxu0 0.0
    %353 = vmatpush1.msra.mxu0 0.0
    %354 = vmatprep.subr.mxu0 0.0
    %355 = vmatpush1.msra.mxu0 0.0
    %356 = vmatprep.subr.mxu0 0.0
    %357 = vmatpush1.msra.mxu0 %v45
    %358 = vmatprep.subr.mxu0 0.0
    %359 = vmatpush1.msra.mxu0 %v44
    %360 = vmatprep.subr.mxu0 0.0
    %361 = vmatpush1.msra.mxu0 %v43
    %362 = vmatprep.subr.mxu0 0.0
    %363 = vmatpush1.msra.mxu0 %v42
    %364 = vmatprep.subr.mxu0 0.0
    %365 = vmatpush2.msra.mxu0 0.0
    %366 = vmatprep.subr.mxu0 0.0
    %367 = vmatpush2.msra.mxu0 0.0
    %368 = vmatprep.subr.mxu0 0.0
    %369 = vmatpush2.msra.mxu0 0.0
    %370 = vmatprep.subr.mxu0 0.0
    %371 = vmatpush2.msra.mxu0 0.0
    %372 = vmatprep.subr.mxu0 0.0
    %373 = vmatpush2.msra.mxu0 0.0
    %374 = vmatprep.subr.mxu0 0.0
    %375 = vmatpush2.msra.mxu0 0.0
    %376 = vmatprep.subr.mxu0 0.0
    %377 = vmatpush2.msra.mxu0 0.0
    %378 = vmatprep.subr.mxu0 0.0
    %379 = vmatpush2.msra.mxu0 0.0
    %380 = vmatprep.subr.mxu0 0.0
    %381 = vmatpush2.msra.mxu0 0.0
    %382 = vmatprep.subr.mxu0 0.0
    %383 = vmatpush2.msra.mxu0 0.0
    %384 = vmatprep.subr.mxu0 0.0
    %385 = vmatpush2.msra.mxu0 0.0
    %386 = vmatprep.subr.mxu0 0.0
    %387 = vmatpush2.msra.mxu0 0.0
    %388 = vmatprep.subr.mxu0 0.0
    %389 = vmatpush2.msra.mxu0 0.0
    %390 = vmatprep.subr.mxu0 0.0
    %391 = vmatpush2.msra.mxu0 0.0
    %392 = vmatprep.subr.mxu0 0.0
    %393 = vmatpush2.msra.mxu0 0.0
    %394 = vmatprep.subr.mxu0 0.0
    %395 = vmatpush2.msra.mxu0 0.0
    %396 = vmatprep.mubr.f32.mxu0 0.0
    %397 = vmatmul.mubr.f32.gmra.mxu0 %v327
    %v398 = vpop.f32.mrf.mxu0
    %v399 = vadd.f32 %v325, %v398
    %v400 = vpop.f32.mrf.mxu0
    %401 = vmatprep.mubr.f32.mxu0 0.0
    %402 = vmatmul.mubr.f32.gmra.mxu0 %v330
    %v403 = vpop.f32.mrf.mxu0
    %v404 = vadd.f32 %v325, %v403
    %v405 = vpop.f32.mrf.mxu0
    %406 = vdwg.mxu0
    %v407 = vmul.f32 %v399, %v399
    %v408 = vmul.f32 %v404, %v404
    %v409 = vmul.f32 %v399, %v407
    %v410 = vmul.f32 %v404, %v408
    %v411 = vmul.f32 %v409, 0.044715
    %v412 = vmul.f32 %v410, 0.044715
    %v413 = vadd.f32 %v399, %v411
    %v414 = vadd.f32 %v404, %v412
    %v415 = vmul.f32 %v413, 0.7978846
    %v416 = vmul.f32 %v414, 0.7978846
    %v417 = vtanh.pop %v415
    %v418 = vtanh.pop %v416
    %v419 = vadd.f32 %v417, 1.0
    %v420 = vadd.f32 %v418, 1.0
    %v421 = vmul.f32 %v419, 0.5
    %v422 = vmul.f32 %v420, 0.5
    %v423 = vmul.f32 %v399, %v421
    %v424 = vmul.f32 %v404, %v422
    %427 = vrot.lane.b32.xlu0 %v423, 32
    %v428 = vpop.permute.xlu0 %427
    %429 = vrot.lane.b32.xlu0 %v424, 32
    %v430 = vpop.permute.xlu0 %429
    %v433 = vsel %vm131, %v314, %v428
    %v434 = vsel %vm131, %v319, %v430
    %v435 = vld [vmem:[%s2] sm:$0xff]
    %v436 = vld [vmem:[%s2 + $0x8] sm:$0xff]
    %v437 = vld [vmem:[%s2 + $0x10] sm:$0xff]
    %v438 = vld [vmem:[%s2 + $0x18] sm:$0xff]
    %v439 = vld [vmem:[%s2 + $0x20] sm:$0xff]
    %v440 = vld [vmem:[%s2 + $0x28] sm:$0xff]
    %v441 = vld [vmem:[%s2 + $0x30] sm:$0xff]
    %v442 = vld [vmem:[%s2 + $0x38] sm:$0xff]
    %v443 = vld [vmem:[%s2 + $0x40] sm:$0x1]
    %v444 = vlaneseq
    %v445 = vshrl.u32 %v444, 7
    %v446 = vsub.s32 0, %v445
    %v447 = vrot.slane %v443, %v446
    %vm448 = vcmask 523264
    %v450 = vsel %vm448, %v433, 0
    %v453 = vsel %vm448, %v434, 0
    %455 = vmatprep.subr.mxu0 0.0
    %456 = vmatpush1.msra.mxu0 0.0
    %457 = vmatprep.subr.mxu0 0.0
    %458 = vmatpush1.msra.mxu0 0.0
    %459 = vmatprep.subr.mxu0 0.0
    %460 = vmatpush1.msra.mxu0 0.0
    %461 = vmatprep.subr.mxu0 0.0
    %462 = vmatpush1.msra.mxu0 0.0
    %463 = vmatprep.subr.mxu0 0.0
    %464 = vmatpush1.msra.mxu0 0.0
    %465 = vmatprep.subr.mxu0 0.0
    %466 = vmatpush1.msra.mxu0 0.0
    %467 = vmatprep.subr.mxu0 0.0
    %468 = vmatpush1.msra.mxu0 0.0
    %469 = vmatprep.subr.mxu0 0.0
    %470 = vmatpush1.msra.mxu0 0.0
    %471 = vmatprep.subr.mxu0 0.0
    %472 = vmatpush1.msra.mxu0 %v442
    %473 = vmatprep.subr.mxu0 0.0
    %474 = vmatpush1.msra.mxu0 %v441
    %475 = vmatprep.subr.mxu0 0.0
    %476 = vmatpush1.msra.mxu0 %v440
    %477 = vmatprep.subr.mxu0 0.0
    %478 = vmatpush1.msra.mxu0 %v439
    %479 = vmatprep.subr.mxu0 0.0
    %480 = vmatpush1.msra.mxu0 %v438
    %481 = vmatprep.subr.mxu0 0.0
    %482 = vmatpush1.msra.mxu0 %v437
    %483 = vmatprep.subr.mxu0 0.0
    %484 = vmatpush1.msra.mxu0 %v436
    %485 = vmatprep.subr.mxu0 0.0
    %486 = vmatpush1.msra.mxu0 %v435
    %487 = vmatprep.subr.mxu0 0.0
    %488 = vmatpush2.msra.mxu0 0.0
    %489 = vmatprep.subr.mxu0 0.0
    %490 = vmatpush2.msra.mxu0 0.0
    %491 = vmatprep.subr.mxu0 0.0
    %492 = vmatpush2.msra.mxu0 0.0
    %493 = vmatprep.subr.mxu0 0.0
    %494 = vmatpush2.msra.mxu0 0.0
    %495 = vmatprep.subr.mxu0 0.0
    %496 = vmatpush2.msra.mxu0 0.0
    %497 = vmatprep.subr.mxu0 0.0
    %498 = vmatpush2.msra.mxu0 0.0
    %499 = vmatprep.subr.mxu0 0.0
    %500 = vmatpush2.msra.mxu0 0.0
    %501 = vmatprep.subr.mxu0 0.0
    %502 = vmatpush2.msra.mxu0 0.0
    %503 = vmatprep.subr.mxu0 0.0
    %504 = vmatpush2.msra.mxu0 0.0
    %505 = vmatprep.subr.mxu0 0.0
    %506 = vmatpush2.msra.mxu0 0.0
    %507 = vmatprep.subr.mxu0 0.0
    %508 = vmatpush2.msra.mxu0 0.0
    %509 = vmatprep.subr.mxu0 0.0
    %510 = vmatpush2.msra.mxu0 0.0
    %511 = vmatprep.subr.mxu0 0.0
    %512 = vmatpush2.msra.mxu0 0.0
    %513 = vmatprep.subr.mxu0 0.0
    %514 = vmatpush2.msra.mxu0 0.0
    %515 = vmatprep.subr.mxu0 0.0
    %516 = vmatpush2.msra.mxu0 0.0
    %517 = vmatprep.subr.mxu0 0.0
    %518 = vmatpush2.msra.mxu0 0.0
    %519 = vmatprep.mubr.f32.mxu0 0.0
    %520 = vmatmul.mubr.f32.gmra.mxu0 %v450
    %v521 = vpop.f32.mrf.mxu0
    %v522 = vadd.f32 %v447, %v521
    %v523 = vpop.f32.mrf.mxu0
    %524 = vmatprep.mubr.f32.mxu0 0.0
    %525 = vmatmul.mubr.f32.gmra.mxu0 %v453
    %v526 = vpop.f32.mrf.mxu0
    %v527 = vadd.f32 %v447, %v526
    %v528 = vpop.f32.mrf.mxu0
    %529 = vdwg.mxu0
    %530 = vst [vmem:[#allocation2] sm:$0xff] %v522
    %531 = vst [vmem:[#allocation2 + $0x8] sm:$0xff] %v527
    // Predicated region
    $region14: #{tpu_custom_call.1} parent=1 // pred_check
      _
    $region15: #{tpu_custom_call.1} parent=1 // pred_check_branch
      %533 = sbr.rel (0) target = $region17
    $region16: #{tpu_custom_call.1} parent=1 // pred_region
      %s535 = ssub.s32 256, 256
      %536 = vsyncadd [#allocation3], %s535
      %s537 = sshll.u32 [#allocation2], 4
      %s538 = int_to_ptr.vmem [resolvable:$true] %s537
      %543 = dma.vmem_to_hbm [thread:$0]  %s538, 256, %s3, [#allocation3], 128, 128, 8
    $region17: #{tpu_custom_call.1} parent=1 // pred_fallthru
      _
    // Predicated region
    $region18: #{tpu_custom_call.1} parent=1 // pred_check
      _
    $region19: #{tpu_custom_call.1} parent=1 // pred_check_branch
      %545 = sbr.rel (0) target = $region21
    $region20: #{tpu_custom_call.1} parent=1 // pred_region
      %546 = dma.done [#allocation3], 256
    $region21: #{tpu_custom_call.1} parent=1 // pred_fallthru
      _
    %547 = vsyncpa [#allocation3], 1

</llo_original>
